<compile_context>
chip_gen: v7x
topology: tpu7x:2x2x1
jax: 0.10.0
libtpu: 0.0.40
codegen_flags: <defaults>
</compile_context>

<pallas_src>
import jax
import jax.numpy as jnp
from jax.experimental import pallas as pl
from jax.experimental.pallas import tpu as pltpu


# ------------------------------ Pallas kernel -------------------------------

def _make_bridge_kernel(c_list5, streamed):
    """Build the fused pooling + (folded conv+linear) + sigmoid kernel."""
    offsets, off = [], 0
    for c in c_list5:
        offsets.append(off)
        off += c

    def kernel(t1_ref, t2_ref, t3_ref, t4_ref, t5_ref,   # (B, C_i, chunk_i)
               w_ref,                                     # (C_sum, C_tot) folded
               b_ref,                                     # (1, C_tot)
               out_ref,                                   # (B, C_tot)
               acc_ref):                                  # VMEM (B, C_sum) f32
        k = pl.program_id(0)

        @pl.when(k == 0)
        def _init():
            acc_ref[...] = jnp.zeros_like(acc_ref)

        stage_refs = (t1_ref, t2_ref, t3_ref, t4_ref, t5_ref)
        for i, r in enumerate(stage_refs):
            off_i, c_i = offsets[i], c_list5[i]

            def _accum(r=r, off_i=off_i, c_i=c_i):
                # Raw spatial sum of this chunk (cast to f32 on the VPU);
                # the 1/(H*W) mean divisor is folded into w_ref.
                part = jnp.sum(r[...].astype(jnp.float32), axis=-1)  # (B, C_i)
                acc_ref[:, off_i:off_i + c_i] += part

            if streamed[i]:
                _accum()                    # streamed stage: one chunk per step
            else:
                pl.when(k == 0)(_accum)     # resident stage: add exactly once

        @pl.when(k == pl.num_programs(0) - 1)
        def _finalize():
            logits = jnp.dot(acc_ref[...], w_ref[...],
                             preferred_element_type=jnp.float32)
            out_ref[...] = jax.nn.sigmoid(logits + b_ref[...])

    return kernel


# --------------------------- chunk / VMEM planning ---------------------------

def _pick_n_chunks(areas, target_chunk_lanes):
    """Grid size: chunk the largest stage into ~target-lane pieces, keeping
    the chunk a multiple of 128 lanes (BlockSpec (8,128) rule)."""
    s_max = max(areas)
    n = max(1, s_max // max(1, target_chunk_lanes))
    while n > 1 and not (s_max % n == 0 and (s_max // n) % 128 == 0):
        n -= 1
    return n


def _stage_plan(area, n_chunks):
    """(chunk_len, streamed) for one stage, honoring the (8,128) block rule."""
    if n_chunks > 1 and area % n_chunks == 0 and (area // n_chunks) % 128 == 0:
        return area // n_chunks, True
    return area, False          # too small to chunk on 128-lane boundaries


def _round_up(x, m):
    return -(-x // m) * m


# ------------------------------- JAX wrapper --------------------------------

def channel_att_bridge(params, ts, expand=True, target_chunk_lanes=2048):
    """Pallas implementation of Channel_Att_Bridge.forward (split_att='fc').

    params: {"conv_w": (3,), "w_all": (C_sum, C_tot), "b_all": (1, C_tot)}
            (w_all / b_all are the 5 Linear layers concatenated along out-dim).
    ts:     tuple of 5 NCHW tensors (t1..t5), any float dtype (no wrapper cast).
    expand=True  -> per-stage tensors broadcast to each t_i's shape (module).
    expand=False -> raw (B, C_i) attention (preferred for a fused consumer).
    """
    B = int(ts[0].shape[0])
    c5 = tuple(int(t.shape[1]) for t in ts)
    areas = tuple(int(t.shape[2]) * int(t.shape[3]) for t in ts)
    c_sum = sum(c5)
    c_tot = int(params["w_all"].shape[1])
    assert int(params["w_all"].shape[0]) == c_sum

    # --- Fold Conv1d(1,1,3,pad=1) + the mean divisor into the linear weights.
    #     logits = conv(mean_pool) @ W_all  ==  raw_sums @ W_eff  with
    #     W_eff[r] = (w1*W[r] + w0*W[r+1] + w2*W[r-1]) / HW(stage of r).
    w_all = params["w_all"].astype(jnp.float32)                 # (C_sum, C_tot)
    cw = params["conv_w"].astype(jnp.float32).reshape(3)
    mw = (cw[1] * w_all
          + cw[0] * jnp.pad(w_all[1:], ((0, 1), (0, 0)))        # rows shifted up
          + cw[2] * jnp.pad(w_all[:-1], ((1, 0), (0, 0))))      # rows shifted down
    inv_area = jnp.concatenate(
        [jnp.full((c,), 1.0 / a, jnp.float32) for c, a in zip(c5, areas)])
    w_eff = inv_area[:, None] * mw                              # (C_sum, C_tot)
    b_all = params["b_all"].astype(jnp.float32).reshape(1, c_tot)

    # --- Streaming plan: one grid axis over spatial chunks.
    n_chunks = _pick_n_chunks(areas, target_chunk_lanes)
    plans = tuple(_stage_plan(a, n_chunks) for a in areas)
    chunks = tuple(p[0] for p in plans)
    streamed = tuple(p[1] for p in plans)

    flat, in_specs = [], []
    for t, c, chunk, is_str in zip(ts, c5, chunks, streamed):
        flat.append(t.reshape(B, c, t.shape[2] * t.shape[3]))   # no dtype cast
        if is_str:
            in_specs.append(pl.BlockSpec((B, c, chunk), lambda k: (0, 0, k)))
        else:  # resident: constant block index -> DMA'd once, not re-fetched
            in_specs.append(pl.BlockSpec((B, c, chunk), lambda k: (0, 0, 0)))
    in_specs.append(pl.BlockSpec((c_sum, c_tot), lambda k: (0, 0)))   # w_eff
    in_specs.append(pl.BlockSpec((1, c_tot), lambda k: (0, 0)))       # b_all

    # --- VMEM budget: double-buffered input chunks + weights + acc + out.
    itemsize = jnp.dtype(ts[0].dtype).itemsize
    est = 0
    for c, chunk in zip(c5, chunks):
        est += 2 * B * _round_up(c, 8) * _round_up(chunk, 128) * itemsize
    est += 2 * _round_up(c_sum, 8) * _round_up(c_tot, 128) * 4        # w_eff
    est += 2 * 8 * _round_up(c_tot, 128) * 4                          # b_all
    est += _round_up(B, 8) * _round_up(c_sum, 128) * 4                # acc
    est += 2 * _round_up(B, 8) * _round_up(c_tot, 128) * 4            # out
    vmem_limit = int(min(48 << 20, max(16 << 20, 2 * est)))           # v7x-safe

    kernel = _make_bridge_kernel(c5, streamed)
    att_all = pl.pallas_call(
        kernel,
        out_shape=jax.ShapeDtypeStruct((B, c_tot), jnp.float32),
        grid_spec=pltpu.PrefetchScalarGridSpec(
            num_scalar_prefetch=0,
            grid=(n_chunks,),
            in_specs=in_specs,
            out_specs=pl.BlockSpec((B, c_tot), lambda k: (0, 0)),
            scratch_shapes=[pltpu.VMEM((B, c_sum), jnp.float32)],
        ),
        compiler_params=pltpu.CompilerParams(
            dimension_semantics=("arbitrary",),     # sequential reduction axis
            vmem_limit_bytes=vmem_limit,
        ),
    )(*flat, w_eff, b_all)

    # Split per stage.
    atts, off = [], 0
    for c in c5:
        atts.append(att_all[:, off:off + c])
        off += c
    if not expand:
        return tuple(atts)
    # expand_as broadcast glue (module semantics).
    return tuple(jnp.broadcast_to(a[:, :, None, None], t.shape)
                 for a, t in zip(atts, ts))


# ---------------------------- pure-JAX reference ----------------------------

def ref_forward(params, ts):
    pooled = jnp.concatenate(
        [jnp.mean(t.astype(jnp.float32), axis=(2, 3)) for t in ts], axis=1)
    cw = params["conv_w"]
    pad = jnp.pad(pooled, ((0, 0), (1, 1)))
    y = cw[0] * pad[:, :-2] + cw[1] * pad[:, 1:-1] + cw[2] * pad[:, 2:]
    att = jax.nn.sigmoid(y @ params["w_all"] + params["b_all"])
    outs, off = [], 0
    for t in ts:
        c = t.shape[1]
        outs.append(jnp.broadcast_to(att[:, off:off + c][:, :, None, None],
                                     t.shape))
        off += c
    return tuple(outs)


# ---------------------------------- main ------------------------------------

if __name__ == "__main__":
    key = jax.random.PRNGKey(0)
    keys = jax.random.split(key, 16)

    # Module config: c_list has 6 entries, the bridge consumes the first 5.
    c_list = (8, 16, 24, 32, 48, 64)
    c5 = c_list[:5]
    c_sum = sum(c5)                 # 128
    B = 2
    spatial = (32, 16, 16, 8, 8)    # S = (1024, 256, 256, 64, 64)

    # Inputs t1..t5 (NCHW, native dtype — no wrapper-side cast).
    ts = tuple(
        jax.random.normal(keys[i], (B, c5[i], spatial[i], spatial[i]),
                          jnp.float32)
        for i in range(5)
    )

    # Deterministic synthetic parameters.
    conv_w = jax.random.normal(keys[5], (3,), jnp.float32) * 0.5   # Conv1d(1,1,3)
    w_list, b_list = [], []
    scale = 1.0 / jnp.sqrt(jnp.float32(c_sum))
    for i in range(5):
        # nn.Linear(c_sum, c_i): W_i is (c_i, c_sum); store W_i^T.
        w_list.append(jax.random.normal(keys[6 + i], (c_sum, c5[i]),
                                        jnp.float32) * scale)
        b_list.append(jax.random.normal(keys[11 + i], (c5[i],),
                                        jnp.float32) * 0.1)
    params = {
        "conv_w": conv_w,
        "w_all": jnp.concatenate(w_list, axis=1),           # (C_sum, C_tot)
        "b_all": jnp.concatenate(b_list)[None, :],          # (1, C_tot)
    }

    # target_chunk_lanes=512 so the small test still exercises the streaming
    # grid (n_chunks=2: t1 streams 512-lane chunks, t2/t3 128-lane chunks,
    # t4/t5 stay resident and are added once).
    outs = channel_att_bridge(params, ts, target_chunk_lanes=512)
    outs = jax.block_until_ready(outs)

    refs = ref_forward(params, ts)
    # Tolerance note: folding conv_w and 1/HW into W_eff changes the matmul
    # operands, so the kernel's MXU epilogue (default bf16-input f32-accum
    # passes) differs from the unfused f32 reference at the ~1e-4 level on
    # these sigmoid outputs; 2e-3 covers it with margin.
    for o, r, t in zip(outs, refs, ts):
        assert o.shape == t.shape
        assert jnp.allclose(o, r, atol=2e-3, rtol=2e-3), \
            float(jnp.max(jnp.abs(o - r)))

    print("KERNEL_OK")
</pallas_src>

<mosaic_0001>
module attributes {stable_mosaic.version = 11 : i64} {
  func.func @kernel(%arg0: i32, %arg1: memref<2x8x512xf32, #tpu.memory_space<vmem>>, %arg2: memref<2x16x128xf32, #tpu.memory_space<vmem>>, %arg3: memref<2x24x128xf32, #tpu.memory_space<vmem>>, %arg4: memref<2x32x64xf32, #tpu.memory_space<vmem>>, %arg5: memref<2x48x64xf32, #tpu.memory_space<vmem>>, %arg6: memref<128x128xf32, #tpu.memory_space<vmem>>, %arg7: memref<1x128xf32, #tpu.memory_space<vmem>>, %arg8: memref<2x128xf32, #tpu.memory_space<vmem>>, %arg9: memref<2x128xf32, #tpu.memory_space<vmem>>) attributes {dimension_semantics = [#tpu.dimension_semantics<arbitrary>], iteration_bounds = array<i64: 2>, scalar_prefetch = 0 : i64, scratch_operands = 1 : i64, tpu.core_type = #tpu.core_type<tc>, window_params = [{transform_indices = @transform_0, window_bounds = array<i64: 2, 8, 512>}, {transform_indices = @transform_1, window_bounds = array<i64: 2, 16, 128>}, {transform_indices = @transform_2, window_bounds = array<i64: 2, 24, 128>}, {pipeline_mode = #tpu.pipeline_mode<synchronous>, transform_indices = @transform_3, window_bounds = array<i64: 2, 32, 64>}, {pipeline_mode = #tpu.pipeline_mode<synchronous>, transform_indices = @transform_4, window_bounds = array<i64: 2, 48, 64>}, {pipeline_mode = #tpu.pipeline_mode<synchronous>, transform_indices = @transform_5, window_bounds = array<i64: 128, 128>}, {pipeline_mode = #tpu.pipeline_mode<synchronous>, transform_indices = @transform_6, window_bounds = array<i64: 1, 128>}, {pipeline_mode = #tpu.pipeline_mode<synchronous>, transform_indices = @transform_7, window_bounds = array<i64: 2, 128>}]} {
    %c0_i32 = arith.constant 0 : i32
    %0 = arith.cmpi eq, %arg0, %c0_i32 : i32
    %1 = arith.extui %0 : i1 to i32
    %c0_i32_0 = arith.constant 0 : i32
    %2 = arith.cmpi ne, %1, %c0_i32_0 : i32
    scf.if %2 {
      %cst_26 = arith.constant 0.000000e+00 : f32
      %27 = vector.broadcast %cst_26 : f32 to vector<2x128xf32>
      %c0_27 = arith.constant 0 : index
      %c0_28 = arith.constant 0 : index
      %28 = vector.load %arg9[%c0_27, %c0_28] : memref<2x128xf32, #tpu.memory_space<vmem>>, vector<2x128xf32>
      tpu.vector_store %arg9[%c0_27, %c0_28], %27 {strides = array<i32>} : memref<2x128xf32, #tpu.memory_space<vmem>>, vector<2x128xf32>,
    } else {
    }
    %c0 = arith.constant 0 : index
    %c0_1 = arith.constant 0 : index
    %c0_2 = arith.constant 0 : index
    %3 = vector.load %arg1[%c0, %c0_1, %c0_2] : memref<2x8x512xf32, #tpu.memory_space<vmem>>, vector<2x8x512xf32>
    %cst = arith.constant dense<0.000000e+00> : vector<2x8xf32>
    %4 = vector.multi_reduction <add>, %3, %cst [2] : vector<2x8x512xf32> to vector<2x8xf32>
    %c0_3 = arith.constant 0 : index
    %c0_4 = arith.constant 0 : index
    %5 = vector.load %arg9[%c0_3, %c0_4] : memref<2x128xf32, #tpu.memory_space<vmem>>, vector<2x8xf32>
    %6 = arith.addf %5, %4 : vector<2x8xf32>
    %c0_5 = arith.constant 0 : index
    %c0_6 = arith.constant 0 : index
    %7 = vector.load %arg9[%c0_5, %c0_6] : memref<2x128xf32, #tpu.memory_space<vmem>>, vector<2x8xf32>
    tpu.vector_store %arg9[%c0_5, %c0_6], %6 {strides = array<i32>} : memref<2x128xf32, #tpu.memory_space<vmem>>, vector<2x8xf32>,
    %c0_7 = arith.constant 0 : index
    %c0_8 = arith.constant 0 : index
    %c0_9 = arith.constant 0 : index
    %8 = vector.load %arg2[%c0_7, %c0_8, %c0_9] : memref<2x16x128xf32, #tpu.memory_space<vmem>>, vector<2x16x128xf32>
    %cst_10 = arith.constant dense<0.000000e+00> : vector<2x16xf32>
    %9 = vector.multi_reduction <add>, %8, %cst_10 [2] : vector<2x16x128xf32> to vector<2x16xf32>
    %c0_11 = arith.constant 0 : index
    %c8 = arith.constant 8 : index
    %10 = vector.load %arg9[%c0_11, %c8] : memref<2x128xf32, #tpu.memory_space<vmem>>, vector<2x16xf32>
    %11 = arith.addf %10, %9 : vector<2x16xf32>
    %c0_12 = arith.constant 0 : index
    %c8_13 = arith.constant 8 : index
    %12 = vector.load %arg9[%c0_12, %c8_13] : memref<2x128xf32, #tpu.memory_space<vmem>>, vector<2x16xf32>
    tpu.vector_store %arg9[%c0_12, %c8_13], %11 {strides = array<i32>} : memref<2x128xf32, #tpu.memory_space<vmem>>, vector<2x16xf32>,
    %c0_14 = arith.constant 0 : index
    %c0_15 = arith.constant 0 : index
    %c0_16 = arith.constant 0 : index
    %13 = vector.load %arg3[%c0_14, %c0_15, %c0_16] : memref<2x24x128xf32, #tpu.memory_space<vmem>>, vector<2x24x128xf32>
    %cst_17 = arith.constant dense<0.000000e+00> : vector<2x24xf32>
    %14 = vector.multi_reduction <add>, %13, %cst_17 [2] : vector<2x24x128xf32> to vector<2x24xf32>
    %c0_18 = arith.constant 0 : index
    %c24 = arith.constant 24 : index
    %15 = vector.load %arg9[%c0_18, %c24] : memref<2x128xf32, #tpu.memory_space<vmem>>, vector<2x24xf32>
    %16 = arith.addf %15, %14 : vector<2x24xf32>
    %c0_19 = arith.constant 0 : index
    %c24_20 = arith.constant 24 : index
    %17 = vector.load %arg9[%c0_19, %c24_20] : memref<2x128xf32, #tpu.memory_space<vmem>>, vector<2x24xf32>
    tpu.vector_store %arg9[%c0_19, %c24_20], %16 {strides = array<i32>} : memref<2x128xf32, #tpu.memory_space<vmem>>, vector<2x24xf32>,
    %c0_i32_21 = arith.constant 0 : i32
    %18 = arith.cmpi eq, %arg0, %c0_i32_21 : i32
    %19 = arith.extui %18 : i1 to i32
    %c0_i32_22 = arith.constant 0 : i32
    %20 = arith.cmpi ne, %19, %c0_i32_22 : i32
    scf.if %20 {
      %c0_26 = arith.constant 0 : index
      %c0_27 = arith.constant 0 : index
      %c0_28 = arith.constant 0 : index
      %27 = vector.load %arg4[%c0_26, %c0_27, %c0_28] : memref<2x32x64xf32, #tpu.memory_space<vmem>>, vector<2x32x64xf32>
      %cst_29 = arith.constant dense<0.000000e+00> : vector<2x32xf32>
      %28 = vector.multi_reduction <add>, %27, %cst_29 [2] : vector<2x32x64xf32> to vector<2x32xf32>
      %c0_30 = arith.constant 0 : index
      %c48 = arith.constant 48 : index
      %29 = vector.load %arg9[%c0_30, %c48] : memref<2x128xf32, #tpu.memory_space<vmem>>, vector<2x32xf32>
      %30 = arith.addf %29, %28 : vector<2x32xf32>
      %c0_31 = arith.constant 0 : index
      %c48_32 = arith.constant 48 : index
      %31 = vector.load %arg9[%c0_31, %c48_32] : memref<2x128xf32, #tpu.memory_space<vmem>>, vector<2x32xf32>
      tpu.vector_store %arg9[%c0_31, %c48_32], %30 {strides = array<i32>} : memref<2x128xf32, #tpu.memory_space<vmem>>, vector<2x32xf32>,
    } else {
    }
    %c0_i32_23 = arith.constant 0 : i32
    %21 = arith.cmpi eq, %arg0, %c0_i32_23 : i32
    %22 = arith.extui %21 : i1 to i32
    %c0_i32_24 = arith.constant 0 : i32
    %23 = arith.cmpi ne, %22, %c0_i32_24 : i32
    scf.if %23 {
      %c0_26 = arith.constant 0 : index
      %c0_27 = arith.constant 0 : index
      %c0_28 = arith.constant 0 : index
      %27 = vector.load %arg5[%c0_26, %c0_27, %c0_28] : memref<2x48x64xf32, #tpu.memory_space<vmem>>, vector<2x48x64xf32>
      %cst_29 = arith.constant dense<0.000000e+00> : vector<2x48xf32>
      %28 = vector.multi_reduction <add>, %27, %cst_29 [2] : vector<2x48x64xf32> to vector<2x48xf32>
      %c0_30 = arith.constant 0 : index
      %c80 = arith.constant 80 : index
      %29 = vector.load %arg9[%c0_30, %c80] : memref<2x128xf32, #tpu.memory_space<vmem>>, vector<2x48xf32>
      %30 = arith.addf %29, %28 : vector<2x48xf32>
      %c0_31 = arith.constant 0 : index
      %c80_32 = arith.constant 80 : index
      %31 = vector.load %arg9[%c0_31, %c80_32] : memref<2x128xf32, #tpu.memory_space<vmem>>, vector<2x48xf32>
      tpu.vector_store %arg9[%c0_31, %c80_32], %30 {strides = array<i32>} : memref<2x128xf32, #tpu.memory_space<vmem>>, vector<2x48xf32>,
    } else {
    }
    %c1_i32 = arith.constant 1 : i32
    %24 = arith.cmpi eq, %arg0, %c1_i32 : i32
    %25 = arith.extui %24 : i1 to i32
    %c0_i32_25 = arith.constant 0 : i32
    %26 = arith.cmpi ne, %25, %c0_i32_25 : i32
    scf.if %26 {
      %c0_26 = arith.constant 0 : index
      %c0_27 = arith.constant 0 : index
      %27 = vector.load %arg9[%c0_26, %c0_27] : memref<2x128xf32, #tpu.memory_space<vmem>>, vector<2x128xf32>
      %c0_28 = arith.constant 0 : index
      %c0_29 = arith.constant 0 : index
      %28 = vector.load %arg6[%c0_28, %c0_29] : memref<128x128xf32, #tpu.memory_space<vmem>>, vector<128x128xf32>
      %cst_30 = arith.constant dense<0.000000e+00> : vector<2x128xf32>
      %29 = tpu.matmul %27, %28, %cst_30 {dimension_numbers = #tpu.dot_dimension_numbers<[1], [0], [0], [1], [0, 0, 1, 1], [], []>} : vector<2x128xf32>, vector<128x128xf32>, vector<2x128xf32> -> vector<2x128xf32>
      %c0_31 = arith.constant 0 : index
      %c0_32 = arith.constant 0 : index
      %30 = vector.load %arg7[%c0_31, %c0_32] : memref<1x128xf32, #tpu.memory_space<vmem>>, vector<1x128xf32>
      %31 = vector.broadcast %30 : vector<1x128xf32> to vector<2x128xf32>
      %32 = arith.addf %29, %31 : vector<2x128xf32>
      %33 = arith.negf %32 : vector<2x128xf32>
      %34 = math.exp %33 : vector<2x128xf32>
      %cst_33 = arith.constant 1.000000e+00 : f32
      %35 = vector.broadcast %cst_33 : f32 to vector<2x128xf32>
      %36 = arith.addf %35, %34 : vector<2x128xf32>
      %37 = arith.divf %35, %36 : vector<2x128xf32>
      %c0_34 = arith.constant 0 : index
      %c0_35 = arith.constant 0 : index
      %38 = vector.load %arg8[%c0_34, %c0_35] : memref<2x128xf32, #tpu.memory_space<vmem>>, vector<2x128xf32>
      tpu.vector_store %arg8[%c0_34, %c0_35], %37 {strides = array<i32>} : memref<2x128xf32, #tpu.memory_space<vmem>>, vector<2x128xf32>,
    } else {
    }
    return
  }
  func.func @transform_0(%arg0: i32) -> (i32, i32, i32) {
    %c0_i32 = arith.constant 0 : i32
    %c0_i32_0 = arith.constant 0 : i32
    %c0_i32_1 = arith.constant 0 : i32
    return %c0_i32, %c0_i32_0, %arg0 : i32, i32, i32
  }
  func.func @transform_1(%arg0: i32) -> (i32, i32, i32) {
    %c0_i32 = arith.constant 0 : i32
    %c0_i32_0 = arith.constant 0 : i32
    %c0_i32_1 = arith.constant 0 : i32
    return %c0_i32, %c0_i32_0, %arg0 : i32, i32, i32
  }
  func.func @transform_2(%arg0: i32) -> (i32, i32, i32) {
    %c0_i32 = arith.constant 0 : i32
    %c0_i32_0 = arith.constant 0 : i32
    %c0_i32_1 = arith.constant 0 : i32
    return %c0_i32, %c0_i32_0, %arg0 : i32, i32, i32
  }
  func.func @transform_3(%arg0: i32) -> (i32, i32, i32) {
    %c0_i32 = arith.constant 0 : i32
    %c0_i32_0 = arith.constant 0 : i32
    %c0_i32_1 = arith.constant 0 : i32
    %c0_i32_2 = arith.constant 0 : i32
    return %c0_i32, %c0_i32_0, %c0_i32_1 : i32, i32, i32
  }
  func.func @transform_4(%arg0: i32) -> (i32, i32, i32) {
    %c0_i32 = arith.constant 0 : i32
    %c0_i32_0 = arith.constant 0 : i32
    %c0_i32_1 = arith.constant 0 : i32
    %c0_i32_2 = arith.constant 0 : i32
    return %c0_i32, %c0_i32_0, %c0_i32_1 : i32, i32, i32
  }
  func.func @transform_5(%arg0: i32) -> (i32, i32) {
    %c0_i32 = arith.constant 0 : i32
    %c0_i32_0 = arith.constant 0 : i32
    %c0_i32_1 = arith.constant 0 : i32
    return %c0_i32, %c0_i32_0 : i32, i32
  }
  func.func @transform_6(%arg0: i32) -> (i32, i32) {
    %c0_i32 = arith.constant 0 : i32
    %c0_i32_0 = arith.constant 0 : i32
    %c0_i32_1 = arith.constant 0 : i32
    return %c0_i32, %c0_i32_0 : i32, i32
  }
  func.func @transform_7(%arg0: i32) -> (i32, i32) {
    %c0_i32 = arith.constant 0 : i32
    %c0_i32_0 = arith.constant 0 : i32
    %c0_i32_1 = arith.constant 0 : i32
    return %c0_i32, %c0_i32_0 : i32, i32
  }
}

</mosaic_0001>

<llo_original>
// kernel: tpu_custom_call.1
$region0: #{tpu_custom_call.1}
  #allocation0 [shape = 'u32[]', space=smem, size = 0x4, offset = 0x4, fixed_abs, tag = 'smem constant byte address 0x4 - core index']
  #allocation1 [shape = 'u32[144,128]{1,0:T(1,128)}', space=vmem, size = 0x12000, scoped, tag = 'internal scratch']
  #allocation2 [shape = 'f32[2,128]{1,0:T(2,128)}', space=vmem, size = 0x400, scoped, tag = 'scratch operand']
  %s0 = inlined_call_operand.hbm [shape: f32[2,8,1024], index: 0, kind: input, shape index: {}]
  %s1 = inlined_call_operand.hbm [shape: f32[2,16,256], index: 1, kind: input, shape index: {}]
  %s2 = inlined_call_operand.hbm [shape: f32[2,24,256], index: 2, kind: input, shape index: {}]
  %s3 = inlined_call_operand.hbm [shape: f32[2,32,64], index: 3, kind: input, shape index: {}]
  %s4 = inlined_call_operand.hbm [shape: f32[2,48,64], index: 4, kind: input, shape index: {}]
  %s5 = inlined_call_operand.hbm [shape: f32[128,128], index: 5, kind: input, shape index: {}]
  %s6 = inlined_call_operand.vmem [shape: f32[1,128], index: 6, kind: input, shape index: {}]
  %s7 = inlined_call_operand.hbm [shape: f32[2,128], index: 7, kind: output, shape index: {}]
  %s8 = sld [smem:[#allocation0]]
  $region97: #{tpu_custom_call.1} parent=0
    _
  %s10 = ssub.s32 1, %s8
  %s11 = scalar_select 0, %s10, %s8
  $region1: #{tpu_custom_call.1} parent=0
    #allocation3 [shape = 'u8[65536]{0}', space=vmem, size = 0x10000, scoped, tag = 'input window, operand 0']
    #allocation4 [shape = 's32[2]{0}', space=sflag, size = 0x8, scoped, tag = 'scoped memory for tpu_custom_call.1']
    #allocation5 [shape = 's32[2]{0}', space=sflag, size = 0x8, scoped, tag = 'scoped memory for tpu_custom_call.1']
    #allocation6 [shape = 'u8[32768]{0}', space=vmem, size = 0x8000, scoped, tag = 'input window, operand 1']
    #allocation7 [shape = 's32[2]{0}', space=sflag, size = 0x8, scoped, tag = 'scoped memory for tpu_custom_call.1']
    #allocation8 [shape = 'u8[49152]{0}', space=vmem, size = 0xc000, scoped, tag = 'input window, operand 2']
    #allocation9 [shape = 'u8[32768]{0}', space=vmem, size = 0x8000, scoped, tag = 'input window, operand 3, single buffered']
    #allocation10 [shape = 's32[1]{0}', space=sflag, size = 0x4, scoped, tag = 'scoped memory for tpu_custom_call.1']
    #allocation11 [shape = 'u8[49152]{0}', space=vmem, size = 0xc000, scoped, tag = 'input window, operand 4, single buffered']
    #allocation12 [shape = 'u8[65536]{0}', space=vmem, size = 0x10000, scoped, tag = 'input window, operand 5, single buffered']
    #allocation13 [shape = 's32[1]{0}', space=sflag, size = 0x4, scoped, tag = 'scoped memory for tpu_custom_call.1']
    #allocation14 [shape = 'u8[1024]{0}', space=vmem, size = 0x400, scoped, tag = 'output window, operand 0, single buffered']
    %12 = vsyncpa [#allocation4], 0
    %s13 = scalar_lea.sflag [#allocation4], 1
    %14 = vsyncpa %s13, 0
    %15 = vsyncpa [#allocation7], 0
    %s16 = scalar_lea.sflag [#allocation7], 1
    %17 = vsyncpa %s16, 0
    %18 = vsyncpa [#allocation10], 0
    %19 = vsyncpa [#allocation13], 0
    %20 = vsyncpa [#allocation5], 0
    loop: start=0, step=1, limit=4
    $region2: #{tpu_custom_call.1} parent=1 // loop_pre_header
      _
    $region3: #{tpu_custom_call.1} parent=1 // loop_header
      %s22 = sphi 0, %s26
      %p23 = scmp.ge.s32.totalorder %s22, 4
      %s32 = sphi 0, %s34
      %s35 = sphi 0, %s32
      %s36 = sphi 0, %s35
      %s52 = sphi 0, %s36
      %s58 = sphi 0, %s60
      %s61 = sphi 0, %s58
      %s62 = sphi 0, %s61
      %s78 = sphi 0, %s62
      %s84 = sphi 0, %s86
      %s87 = sphi 0, %s84
      %s88 = sphi 0, %s87
      %s104 = sphi 0, %s88
      %s108 = sphi 0, %s108
      %s110 = sphi 0, %s108
      %s111 = sphi 0, %s110
      %s125 = sphi 0, %s111
      %s129 = sphi 0, %s129
      %s131 = sphi 0, %s129
      %s132 = sphi 0, %s131
      %s146 = sphi 0, %s132
      %s150 = sphi 0, %s150
      %s152 = sphi 0, %s150
      %s153 = sphi 0, %s152
      %s167 = sphi 0, %s153
      %s171 = sphi 0, %s171
      %s173 = sphi 0, %s171
      %s174 = sphi 0, %s173
      %s188 = sphi 0, %s174
      %s192 = sphi 0, %s192
      %s194 = sphi 0, %s192
      %s195 = sphi 0, %s194
      %s209 = sphi 0, %s195
    $region4: #{tpu_custom_call.1} parent=1 // loop_header_branch
      %25 = sbr.rel (%p23) target = $region8
    $region5: #{tpu_custom_call.1} parent=1 // loop_body
      %s27 = ssub.s32 %s22, 1
      %s28 = ssub.s32 %s22, 2
      %s29 = sadd.s32 %s22, 1
      %s30 = ssub.s32 %s22, %s29
      %p31 = scmp.eq.s32.totalorder %s30, 0
      %s33 = sadd.s32 %s32, 1
      %s34 = scalar_select %p31, %s32, %s33
      %p37 = pneg %p31
      %p38 = scmp.eq.s32.totalorder %s22, 1
      %p39 = por %p37, %p38
      %p40 = scmp.ne.s32.totalorder %s32, %s35
      %p41 = scmp.eq.s32.totalorder %s22, 0
      %p42 = por %p40, %p41
      %p43 = scmp.ne.s32.totalorder %s32, %s35
      %p44 = scmp.eq.s32.totalorder %s27, 1
      %p45 = por %p43, %p44
      %p46 = scmp.ne.s32.totalorder %s35, %s36
      %p47 = scmp.eq.s32.totalorder %s27, 0
      %p48 = por %p46, %p47
      %p49 = scmp.ne.s32.totalorder %s35, %s36
      %p50 = scmp.eq.s32.totalorder %s28, 1
      %p51 = por %p49, %p50
      %p53 = scmp.ne.s32.totalorder %s36, %s52
      %p54 = scmp.eq.s32.totalorder %s28, 0
      %p55 = por %p53, %p54
      %s56 = ssub.s32 %s22, %s29
      %p57 = scmp.eq.s32.totalorder %s56, 0
      %s59 = sadd.s32 %s58, 1
      %s60 = scalar_select %p57, %s58, %s59
      %p63 = pneg %p57
      %p64 = scmp.eq.s32.totalorder %s22, 1
      %p65 = por %p63, %p64
      %p66 = scmp.ne.s32.totalorder %s58, %s61
      %p67 = scmp.eq.s32.totalorder %s22, 0
      %p68 = por %p66, %p67
      %p69 = scmp.ne.s32.totalorder %s58, %s61
      %p70 = scmp.eq.s32.totalorder %s27, 1
      %p71 = por %p69, %p70
      %p72 = scmp.ne.s32.totalorder %s61, %s62
      %p73 = scmp.eq.s32.totalorder %s27, 0
      %p74 = por %p72, %p73
      %p75 = scmp.ne.s32.totalorder %s61, %s62
      %p76 = scmp.eq.s32.totalorder %s28, 1
      %p77 = por %p75, %p76
      %p79 = scmp.ne.s32.totalorder %s62, %s78
      %p80 = scmp.eq.s32.totalorder %s28, 0
      %p81 = por %p79, %p80
      %s82 = ssub.s32 %s22, %s29
      %p83 = scmp.eq.s32.totalorder %s82, 0
      %s85 = sadd.s32 %s84, 1
      %s86 = scalar_select %p83, %s84, %s85
      %p89 = pneg %p83
      %p90 = scmp.eq.s32.totalorder %s22, 1
      %p91 = por %p89, %p90
      %p92 = scmp.ne.s32.totalorder %s84, %s87
      %p93 = scmp.eq.s32.totalorder %s22, 0
      %p94 = por %p92, %p93
      %p95 = scmp.ne.s32.totalorder %s84, %s87
      %p96 = scmp.eq.s32.totalorder %s27, 1
      %p97 = por %p95, %p96
      %p98 = scmp.ne.s32.totalorder %s87, %s88
      %p99 = scmp.eq.s32.totalorder %s27, 0
      %p100 = por %p98, %p99
      %p101 = scmp.ne.s32.totalorder %s87, %s88
      %p102 = scmp.eq.s32.totalorder %s28, 1
      %p103 = por %p101, %p102
      %p105 = scmp.ne.s32.totalorder %s88, %s104
      %p106 = scmp.eq.s32.totalorder %s28, 0
      %p107 = por %p105, %p106
      %s109 = sadd.s32 %s108, 1
      %p112 = scmp.eq.s32.totalorder %s22, 1
      %p113 = scmp.ne.s32.totalorder %s108, %s110
      %p114 = scmp.eq.s32.totalorder %s22, 0
      %p115 = por %p113, %p114
      %p116 = scmp.ne.s32.totalorder %s108, %s110
      %p117 = scmp.eq.s32.totalorder %s27, 1
      %p118 = por %p116, %p117
      %p119 = scmp.ne.s32.totalorder %s110, %s111
      %p120 = scmp.eq.s32.totalorder %s27, 0
      %p121 = por %p119, %p120
      %p122 = scmp.ne.s32.totalorder %s110, %s111
      %p123 = scmp.eq.s32.totalorder %s28, 1
      %p124 = por %p122, %p123
      %p126 = scmp.ne.s32.totalorder %s111, %s125
      %p127 = scmp.eq.s32.totalorder %s28, 0
      %p128 = por %p126, %p127
      %s130 = sadd.s32 %s129, 1
      %p133 = scmp.eq.s32.totalorder %s22, 1
      %p134 = scmp.ne.s32.totalorder %s129, %s131
      %p135 = scmp.eq.s32.totalorder %s22, 0
      %p136 = por %p134, %p135
      %p137 = scmp.ne.s32.totalorder %s129, %s131
      %p138 = scmp.eq.s32.totalorder %s27, 1
      %p139 = por %p137, %p138
      %p140 = scmp.ne.s32.totalorder %s131, %s132
      %p141 = scmp.eq.s32.totalorder %s27, 0
      %p142 = por %p140, %p141
      %p143 = scmp.ne.s32.totalorder %s131, %s132
      %p144 = scmp.eq.s32.totalorder %s28, 1
      %p145 = por %p143, %p144
      %p147 = scmp.ne.s32.totalorder %s132, %s146
      %p148 = scmp.eq.s32.totalorder %s28, 0
      %p149 = por %p147, %p148
      %s151 = sadd.s32 %s150, 1
      %p154 = scmp.eq.s32.totalorder %s22, 1
      %p155 = scmp.ne.s32.totalorder %s150, %s152
      %p156 = scmp.eq.s32.totalorder %s22, 0
      %p157 = por %p155, %p156
      %p158 = scmp.ne.s32.totalorder %s150, %s152
      %p159 = scmp.eq.s32.totalorder %s27, 1
      %p160 = por %p158, %p159
      %p161 = scmp.ne.s32.totalorder %s152, %s153
      %p162 = scmp.eq.s32.totalorder %s27, 0
      %p163 = por %p161, %p162
      %p164 = scmp.ne.s32.totalorder %s152, %s153
      %p165 = scmp.eq.s32.totalorder %s28, 1
      %p166 = por %p164, %p165
      %p168 = scmp.ne.s32.totalorder %s153, %s167
      %p169 = scmp.eq.s32.totalorder %s28, 0
      %p170 = por %p168, %p169
      %s172 = sadd.s32 %s171, 1
      %p175 = scmp.eq.s32.totalorder %s22, 1
      %p176 = scmp.ne.s32.totalorder %s171, %s173
      %p177 = scmp.eq.s32.totalorder %s22, 0
      %p178 = por %p176, %p177
      %p179 = scmp.ne.s32.totalorder %s171, %s173
      %p180 = scmp.eq.s32.totalorder %s27, 1
      %p181 = por %p179, %p180
      %p182 = scmp.ne.s32.totalorder %s173, %s174
      %p183 = scmp.eq.s32.totalorder %s27, 0
      %p184 = por %p182, %p183
      %p185 = scmp.ne.s32.totalorder %s173, %s174
      %p186 = scmp.eq.s32.totalorder %s28, 1
      %p187 = por %p185, %p186
      %p189 = scmp.ne.s32.totalorder %s174, %s188
      %p190 = scmp.eq.s32.totalorder %s28, 0
      %p191 = por %p189, %p190
      %s193 = sadd.s32 %s192, 1
      %p196 = scmp.eq.s32.totalorder %s22, 1
      %p197 = scmp.ne.s32.totalorder %s192, %s194
      %p198 = scmp.eq.s32.totalorder %s22, 0
      %p199 = por %p197, %p198
      %p200 = scmp.ne.s32.totalorder %s192, %s194
      %p201 = scmp.eq.s32.totalorder %s27, 1
      %p202 = por %p200, %p201
      %p203 = scmp.ne.s32.totalorder %s194, %s195
      %p204 = scmp.eq.s32.totalorder %s27, 0
      %p205 = por %p203, %p204
      %p206 = scmp.ne.s32.totalorder %s194, %s195
      %p207 = scmp.eq.s32.totalorder %s28, 1
      %p208 = por %p206, %p207
      %p210 = scmp.ne.s32.totalorder %s195, %s209
      %p211 = scmp.eq.s32.totalorder %s28, 0
      %p212 = por %p210, %p211
      %p213 = scmp.le.s32.totalorder 1, %s22
      %p214 = scmp.lt.s32.totalorder %s22, 3
      %p215 = pnand %p213, %p214
      %p216 = pneg %p215
      // Predicated region
      $region9: #{tpu_custom_call.1} parent=5 // pred_check
        _
      $region10: #{tpu_custom_call.1} parent=5 // pred_check_branch
        %218 = sbr.rel (%p215) target = $region12
      $region11: #{tpu_custom_call.1} parent=5 // pred_region
        %s219 = ssub.s32 %s22, 1
        // Predicated region
        $region13: #{tpu_custom_call.1} parent=11 // pred_check
          %p220 = pneg %p121
        $region14: #{tpu_custom_call.1} parent=11 // pred_check_branch
          %222 = sbr.rel (%p220) target = $region16
        $region15: #{tpu_custom_call.1} parent=11 // pred_region
          %s224 = ssub.s32 1024, 1024
          %225 = vsyncadd [#allocation10], %s224
          %s226 = sshll.u32 [#allocation9], 4
          %s227 = int_to_ptr.vmem [resolvable:$true] %s226
          %232 = dma.hbm_to_vmem [thread:$0]  %s3, 1024, %s227, [#allocation10], 128, 128, 8
        $region16: #{tpu_custom_call.1} parent=11 // pred_fallthru
          _
        // Predicated region
        $region17: #{tpu_custom_call.1} parent=11 // pred_check
          %p233 = pneg %p142
        $region18: #{tpu_custom_call.1} parent=11 // pred_check_branch
          %235 = sbr.rel (%p233) target = $region20
        $region19: #{tpu_custom_call.1} parent=11 // pred_region
          %s237 = ssub.s32 1536, 1536
          %238 = vsyncadd [#allocation10], %s237
          %s239 = sshll.u32 [#allocation11], 4
          %s240 = int_to_ptr.vmem [resolvable:$true] %s239
          %245 = dma.hbm_to_vmem [thread:$0]  %s4, 1536, %s240, [#allocation10], 128, 128, 8
        $region20: #{tpu_custom_call.1} parent=11 // pred_fallthru
          _
        // Predicated region
        $region21: #{tpu_custom_call.1} parent=11 // pred_check
          %p246 = pneg %p163
        $region22: #{tpu_custom_call.1} parent=11 // pred_check_branch
          %248 = sbr.rel (%p246) target = $region24
        $region23: #{tpu_custom_call.1} parent=11 // pred_region
          %s250 = ssub.s32 2048, 2048
          %251 = vsyncadd [#allocation13], %s250
          %s252 = sshll.u32 [#allocation12], 4
          %s253 = int_to_ptr.vmem [resolvable:$true] %s252
          %258 = dma.hbm_to_vmem [thread:$0]  %s5, 2048, %s253, [#allocation13], 128, 128, 8
        $region24: #{tpu_custom_call.1} parent=11 // pred_fallthru
          _
        // Predicated region
        $region25: #{tpu_custom_call.1} parent=11 // pred_check
          %p259 = pneg %p184
        $region26: #{tpu_custom_call.1} parent=11 // pred_check_branch
          %261 = sbr.rel (%p259) target = $region28
        $region27: #{tpu_custom_call.1} parent=11 // pred_region
          _
        $region28: #{tpu_custom_call.1} parent=11 // pred_fallthru
          _
      $region12: #{tpu_custom_call.1} parent=5 // pred_fallthru
        _
      %p262 = scmp.lt.s32.totalorder %s22, 2
      // Predicated region
      $region29: #{tpu_custom_call.1} parent=5 // pred_check
        %p263 = pneg %p262
      $region30: #{tpu_custom_call.1} parent=5 // pred_check_branch
        %265 = sbr.rel (%p263) target = $region32
      $region31: #{tpu_custom_call.1} parent=5 // pred_region
        // Predicated region
        $region33: #{tpu_custom_call.1} parent=31 // pred_check
          %p266 = pneg %p42
        $region34: #{tpu_custom_call.1} parent=31 // pred_check_branch
          %268 = sbr.rel (%p266) target = $region36
        $region35: #{tpu_custom_call.1} parent=31 // pred_region
          %s269 = sand.u32 %s32, 1
          %s270 = scalar_lea.sflag [#allocation4], %s269
          %s271 = sand.u32 %s32, 1
          %s272 = smul.addr %s271, 64
          %s273 = scalar_lea.vmem [#allocation3], %s272
          %s274 = smul.u32 4, %s22
          %s276 = ssub.s32 1024, 1024
          %277 = vsyncadd %s270, %s276
          %s278 = smul.addr %s274, 128
          %s279 = scalar_lea.hbm %s0, %s278
          %s280 = sshll.u32 %s273, 4
          %s281 = int_to_ptr.vmem [resolvable:$true] %s280
          %286 = dma.hbm_to_vmem [thread:$0]  %s279, 1024, %s281, %s270, 1024, 512, 32
        $region36: #{tpu_custom_call.1} parent=31 // pred_fallthru
          _
        // Predicated region
        $region37: #{tpu_custom_call.1} parent=31 // pred_check
          %p287 = pneg %p68
        $region38: #{tpu_custom_call.1} parent=31 // pred_check_branch
          %289 = sbr.rel (%p287) target = $region40
        $region39: #{tpu_custom_call.1} parent=31 // pred_region
          %s290 = sand.u32 %s22, 1
          %s291 = scalar_lea.sflag [#allocation7], %s290
          %s292 = sand.u32 %s58, 1
          %s293 = smul.addr %s292, 32
          %s294 = scalar_lea.vmem [#allocation6], %s293
          %s296 = ssub.s32 512, 512
          %297 = vsyncadd %s291, %s296
          %s298 = smul.addr %s22, 128
          %s299 = scalar_lea.hbm %s1, %s298
          %s300 = sshll.u32 %s294, 4
          %s301 = int_to_ptr.vmem [resolvable:$true] %s300
          %306 = dma.hbm_to_vmem [thread:$0]  %s299, 512, %s301, %s291, 256, 128, 8
        $region40: #{tpu_custom_call.1} parent=31 // pred_fallthru
          _
        // Predicated region
        $region41: #{tpu_custom_call.1} parent=31 // pred_check
          %p307 = pneg %p94
        $region42: #{tpu_custom_call.1} parent=31 // pred_check_branch
          %309 = sbr.rel (%p307) target = $region44
        $region43: #{tpu_custom_call.1} parent=31 // pred_region
          %s310 = sand.u32 %s22, 1
          %s311 = scalar_lea.sflag [#allocation7], %s310
          %s312 = sand.u32 %s84, 1
          %s313 = smul.addr %s312, 48
          %s314 = scalar_lea.vmem [#allocation8], %s313
          %s316 = ssub.s32 768, 768
          %317 = vsyncadd %s311, %s316
          %s318 = smul.addr %s22, 128
          %s319 = scalar_lea.hbm %s2, %s318
          %s320 = sshll.u32 %s314, 4
          %s321 = int_to_ptr.vmem [resolvable:$true] %s320
          %326 = dma.hbm_to_vmem [thread:$0]  %s319, 768, %s321, %s311, 256, 128, 8
        $region44: #{tpu_custom_call.1} parent=31 // pred_fallthru
          _
      $region32: #{tpu_custom_call.1} parent=5 // pred_fallthru
        _
      %p327 = scmp.le.s32.totalorder 1, %s22
      %p328 = scmp.lt.s32.totalorder %s22, 3
      %p329 = pnand %p327, %p328
      %p330 = pneg %p329
      // Predicated region
      $region45: #{tpu_custom_call.1} parent=5 // pred_check
        _
      $region46: #{tpu_custom_call.1} parent=5 // pred_check_branch
        %332 = sbr.rel (%p329) target = $region48
      $region47: #{tpu_custom_call.1} parent=5 // pred_region
        %s333 = ssub.s32 %s22, 1
        %s334 = sand.u32 %s35, 1
        %s335 = scalar_lea.sflag [#allocation4], %s334
        %s336 = sand.u32 %s35, 1
        %s337 = smul.addr %s336, 64
        %s338 = scalar_lea.vmem [#allocation3], %s337
        // Predicated region
        $region49: #{tpu_custom_call.1} parent=47 // pred_check
          %p339 = pneg %p48
        $region50: #{tpu_custom_call.1} parent=47 // pred_check_branch
          %341 = sbr.rel (%p339) target = $region52
        $region51: #{tpu_custom_call.1} parent=47 // pred_region
          %342 = dma.done %s335, 1024
        $region52: #{tpu_custom_call.1} parent=47 // pred_fallthru
          _
        %s343 = sand.u32 %s27, 1
        %s344 = scalar_lea.sflag [#allocation7], %s343
        %s345 = sand.u32 %s61, 1
        %s346 = smul.addr %s345, 32
        %s347 = scalar_lea.vmem [#allocation6], %s346
        // Predicated region
        $region53: #{tpu_custom_call.1} parent=47 // pred_check
          %p348 = pneg %p74
        $region54: #{tpu_custom_call.1} parent=47 // pred_check_branch
          %350 = sbr.rel (%p348) target = $region56
        $region55: #{tpu_custom_call.1} parent=47 // pred_region
          %351 = dma.done %s344, 512
        $region56: #{tpu_custom_call.1} parent=47 // pred_fallthru
          _
        %s352 = sand.u32 %s27, 1
        %s353 = scalar_lea.sflag [#allocation7], %s352
        %s354 = sand.u32 %s87, 1
        %s355 = smul.addr %s354, 48
        %s356 = scalar_lea.vmem [#allocation8], %s355
        // Predicated region
        $region57: #{tpu_custom_call.1} parent=47 // pred_check
          %p357 = pneg %p100
        $region58: #{tpu_custom_call.1} parent=47 // pred_check_branch
          %359 = sbr.rel (%p357) target = $region60
        $region59: #{tpu_custom_call.1} parent=47 // pred_region
          %360 = dma.done %s353, 768
        $region60: #{tpu_custom_call.1} parent=47 // pred_fallthru
          _
        // Predicated region
        $region61: #{tpu_custom_call.1} parent=47 // pred_check
          %p361 = pneg %p121
        $region62: #{tpu_custom_call.1} parent=47 // pred_check_branch
          %363 = sbr.rel (%p361) target = $region64
        $region63: #{tpu_custom_call.1} parent=47 // pred_region
          %364 = dma.done [#allocation10], 1024
        $region64: #{tpu_custom_call.1} parent=47 // pred_fallthru
          _
        // Predicated region
        $region65: #{tpu_custom_call.1} parent=47 // pred_check
          %p365 = pneg %p142
        $region66: #{tpu_custom_call.1} parent=47 // pred_check_branch
          %367 = sbr.rel (%p365) target = $region68
        $region67: #{tpu_custom_call.1} parent=47 // pred_region
          %368 = dma.done [#allocation10], 1536
        $region68: #{tpu_custom_call.1} parent=47 // pred_fallthru
          _
        // Predicated region
        $region69: #{tpu_custom_call.1} parent=47 // pred_check
          %p369 = pneg %p163
        $region70: #{tpu_custom_call.1} parent=47 // pred_check_branch
          %371 = sbr.rel (%p369) target = $region72
        $region71: #{tpu_custom_call.1} parent=47 // pred_region
          %372 = dma.done [#allocation13], 2048
        $region72: #{tpu_custom_call.1} parent=47 // pred_fallthru
          _
        %s373 = sand.u32 %s35, 1
        %s374 = scalar_lea.sflag [#allocation4], %s373
        %s375 = sand.u32 %s35, 1
        %s376 = smul.addr %s375, 64
        %s377 = scalar_lea.vmem [#allocation3], %s376
        %p378 = pneg %p48
        %p379 = pneg %p45
        %s380 = sand.u32 %s27, 1
        %s381 = scalar_lea.sflag [#allocation7], %s380
        %s382 = sand.u32 %s61, 1
        %s383 = smul.addr %s382, 32
        %s384 = scalar_lea.vmem [#allocation6], %s383
        %p385 = pneg %p74
        %p386 = pneg %p71
        %s387 = sand.u32 %s27, 1
        %s388 = scalar_lea.sflag [#allocation7], %s387
        %s389 = sand.u32 %s87, 1
        %s390 = smul.addr %s389, 48
        %s391 = scalar_lea.vmem [#allocation8], %s390
        %p392 = pneg %p100
        %p393 = pneg %p97
        %p394 = pneg %p121
        %p395 = pneg %p118
        %p396 = pneg %p142
        %p397 = pneg %p139
        %p398 = pneg %p163
        %p399 = pneg %p160
        %p400 = pneg %p184
        %p401 = pneg %p181
        %p402 = pneg %p205
        %p403 = pneg %p202
        %s404 = smul.u32 4, %s27
        %p405 = scmp.eq.s32.totalorder %s27, 0
        // Predicated region
        $region73: #{tpu_custom_call.1} parent=47 // pred_check
          %p406 = pneg %p405
        $region74: #{tpu_custom_call.1} parent=47 // pred_check_branch
          %408 = sbr.rel (%p406) target = $region76
        $region75: #{tpu_custom_call.1} parent=47 // pred_region
          %409 = vst [vmem:[#allocation2] sm:$0x3] 0.0
        $region76: #{tpu_custom_call.1} parent=47 // pred_fallthru
          _
        %v410 = vld [vmem:[%s338] sm:$0xff]
        %v411 = vld [vmem:[%s338 + $0x8] sm:$0xff]
        %v412 = vld [vmem:[%s338 + $0x10] sm:$0xff]
        %v413 = vld [vmem:[%s338 + $0x18] sm:$0xff]
        %v414 = vld [vmem:[%s338 + $0x20] sm:$0xff]
        %v415 = vld [vmem:[%s338 + $0x28] sm:$0xff]
        %v416 = vld [vmem:[%s338 + $0x30] sm:$0xff]
        %v417 = vld [vmem:[%s338 + $0x38] sm:$0xff]
        %v418 = vadd.f32 %v410, %v411
        %v419 = vadd.f32 %v418, %v412
        %v420 = vadd.f32 %v419, %v413
        %421 = vadd.xlane.f32.xlu0 %v420
        %v422 = vpop.xlane.xlu0 %421
        %v423 = vadd.f32 %v414, %v415
        %v424 = vadd.f32 %v423, %v416
        %v425 = vadd.f32 %v424, %v417
        %426 = vadd.xlane.f32.xlu0 %v425
        %v427 = vpop.xlane.xlu0 %426
        %v428 = vld [vmem:[#allocation2] sm:$0x3]
        %v431 = vlaneseq
        %v432 = vand.u32 %v431, 127
        %v433 = vlaneseq
        %v434 = vshrl.u32 %v433, 7
        %v435 = vsub.s32 %v432, %v434
        %v436 = vrot.slane %v422, %v435
        %v437 = vlaneseq
        %v438 = vshrl.u32 %v437, 7
        %v439 = vsub.s32 %v432, %v438
        %v440 = vrot.slane %v427, %v439
        %vm441 = vcmask 1041409
        %v442 = vsel %vm441, %v440, %v436
        %v444 = vadd.f32 %v428, %v442
        %vm445 = vcmask 58368
        %446 = vst.msk [vmem:[#allocation2] sm:$0x3] %vm445, %v444
        %v447 = vld [vmem:[%s347] sm:$0xff]
        %v448 = vld [vmem:[%s347 + $0x8] sm:$0xff]
        %v449 = vld [vmem:[%s347 + $0x10] sm:$0xff]
        %v450 = vld [vmem:[%s347 + $0x18] sm:$0xff]
        %451 = vadd.xlane.f32.xlu0 %v447
        %v452 = vpop.xlane.xlu0 %451
        %453 = vadd.xlane.f32.xlu0 %v448
        %v454 = vpop.xlane.xlu0 %453
        %455 = vadd.xlane.f32.xlu0 %v449
        %v456 = vpop.xlane.xlu0 %455
        %457 = vadd.xlane.f32.xlu0 %v450
        %v458 = vpop.xlane.xlu0 %457
        %v459 = vld [vmem:[#allocation2] sm:$0x3]
        %v464 = vadd.s32 %v432, 4294967288
        %v465 = vlaneseq
        %v466 = vshrl.u32 %v465, 7
        %v467 = vsub.s32 %v464, %v466
        %v468 = vrot.slane %v452, %v467
        %v469 = vadd.s32 %v432, 4294967280
        %v470 = vlaneseq
        %v471 = vshrl.u32 %v470, 7
        %v472 = vsub.s32 %v469, %v471
        %v473 = vrot.slane %v454, %v472
        %vm474 = vcmask 195712
        %v475 = vsel %vm474, %v473, %v468
        %v476 = vlaneseq
        %v477 = vshrl.u32 %v476, 7
        %v478 = vsub.s32 %v464, %v477
        %v479 = vrot.slane %v456, %v478
        %v480 = vlaneseq
        %v481 = vshrl.u32 %v480, 7
        %v482 = vsub.s32 %v469, %v481
        %v483 = vrot.slane %v458, %v482
        %v484 = vsel %vm474, %v483, %v479
        %v485 = vsel %vm441, %v484, %v475
        %v487 = vadd.f32 %v459, %v485
        %vm488 = vcmask 189504
        %489 = vst.msk [vmem:[#allocation2] sm:$0x3] %vm488, %v487
        %v490 = vld [vmem:[%s356] sm:$0xff]
        %v491 = vld [vmem:[%s356 + $0x8] sm:$0xff]
        %v492 = vld [vmem:[%s356 + $0x10] sm:$0xff]
        %v493 = vld [vmem:[%s356 + $0x18] sm:$0xff]
        %v494 = vld [vmem:[%s356 + $0x20] sm:$0xff]
        %v495 = vld [vmem:[%s356 + $0x28] sm:$0xff]
        %496 = vadd.xlane.f32.xlu0 %v490
        %v497 = vpop.xlane.xlu0 %496
        %498 = vadd.xlane.f32.xlu0 %v491
        %v499 = vpop.xlane.xlu0 %498
        %500 = vadd.xlane.f32.xlu0 %v492
        %v501 = vpop.xlane.xlu0 %500
        %502 = vadd.xlane.f32.xlu0 %v493
        %v503 = vpop.xlane.xlu0 %502
        %504 = vadd.xlane.f32.xlu0 %v494
        %v505 = vpop.xlane.xlu0 %504
        %506 = vadd.xlane.f32.xlu0 %v495
        %v507 = vpop.xlane.xlu0 %506
        %v508 = vld [vmem:[#allocation2] sm:$0x3]
        %v515 = vadd.s32 %v432, 4294967272
        %v516 = vlaneseq
        %v517 = vshrl.u32 %v516, 7
        %v518 = vsub.s32 %v515, %v517
        %v519 = vrot.slane %v497, %v518
        %v520 = vadd.s32 %v432, 4294967264
        %v521 = vlaneseq
        %v522 = vshrl.u32 %v521, 7
        %v523 = vsub.s32 %v520, %v522
        %v524 = vrot.slane %v499, %v523
        %vm525 = vcmask 326912
        %v526 = vsel %vm525, %v524, %v519
        %v527 = vadd.s32 %v432, 4294967256
        %v528 = vlaneseq
        %v529 = vshrl.u32 %v528, 7
        %v530 = vsub.s32 %v527, %v529
        %v531 = vrot.slane %v501, %v530
        %vm532 = vcmask 392512
        %v533 = vsel %vm532, %v531, %v526
        %v534 = vlaneseq
        %v535 = vshrl.u32 %v534, 7
        %v536 = vsub.s32 %v515, %v535
        %v537 = vrot.slane %v503, %v536
        %v538 = vlaneseq
        %v539 = vshrl.u32 %v538, 7
        %v540 = vsub.s32 %v520, %v539
        %v541 = vrot.slane %v505, %v540
        %v542 = vsel %vm525, %v541, %v537
        %v543 = vlaneseq
        %v544 = vshrl.u32 %v543, 7
        %v545 = vsub.s32 %v527, %v544
        %v546 = vrot.slane %v507, %v545
        %v547 = vsel %vm532, %v546, %v542
        %v548 = vsel %vm441, %v547, %v533
        %v550 = vadd.f32 %v508, %v548
        %vm551 = vcmask 386240
        %552 = vst.msk [vmem:[#allocation2] sm:$0x3] %vm551, %v550
        // Predicated region
        $region77: #{tpu_custom_call.1} parent=47 // pred_check
          %p553 = pneg %p405
        $region78: #{tpu_custom_call.1} parent=47 // pred_check_branch
          %555 = sbr.rel (%p553) target = $region80
        $region79: #{tpu_custom_call.1} parent=47 // pred_region
          %v556 = vld [vmem:[#allocation9] sm:$0xff]
          %v557 = vld [vmem:[#allocation9 + $0x8] sm:$0xff]
          %v558 = vld [vmem:[#allocation9 + $0x10] sm:$0xff]
          %v559 = vld [vmem:[#allocation9 + $0x18] sm:$0xff]
          %v560 = vld [vmem:[#allocation9 + $0x20] sm:$0xff]
          %v561 = vld [vmem:[#allocation9 + $0x28] sm:$0xff]
          %v562 = vld [vmem:[#allocation9 + $0x30] sm:$0xff]
          %v563 = vld [vmem:[#allocation9 + $0x38] sm:$0xff]
          %vm564 = vcmask 523264
          %v565 = vsel %vm564, %v556, 0.0
          %566 = vadd.xlane.f32.xlu0 %v565
          %v567 = vpop.xlane.xlu0 %566
          %v568 = vsel %vm564, %v557, 0.0
          %569 = vadd.xlane.f32.xlu0 %v568
          %v570 = vpop.xlane.xlu0 %569
          %v571 = vsel %vm564, %v558, 0.0
          %572 = vadd.xlane.f32.xlu0 %v571
          %v573 = vpop.xlane.xlu0 %572
          %v574 = vsel %vm564, %v559, 0.0
          %575 = vadd.xlane.f32.xlu0 %v574
          %v576 = vpop.xlane.xlu0 %575
          %v577 = vsel %vm564, %v560, 0.0
          %578 = vadd.xlane.f32.xlu0 %v577
          %v579 = vpop.xlane.xlu0 %578
          %v580 = vsel %vm564, %v561, 0.0
          %581 = vadd.xlane.f32.xlu0 %v580
          %v582 = vpop.xlane.xlu0 %581
          %v583 = vsel %vm564, %v562, 0.0
          %584 = vadd.xlane.f32.xlu0 %v583
          %v585 = vpop.xlane.xlu0 %584
          %v586 = vsel %vm564, %v563, 0.0
          %587 = vadd.xlane.f32.xlu0 %v586
          %v588 = vpop.xlane.xlu0 %587
          %v589 = vld [vmem:[#allocation2] sm:$0x3]
          %v598 = vadd.s32 %v432, 4294967248
          %v599 = vlaneseq
          %v600 = vshrl.u32 %v599, 7
          %v601 = vsub.s32 %v598, %v600
          %v602 = vrot.slane %v567, %v601
          %v603 = vadd.s32 %v432, 4294967240
          %v604 = vlaneseq
          %v605 = vshrl.u32 %v604, 7
          %v606 = vsub.s32 %v603, %v605
          %v607 = vrot.slane %v570, %v606
          %vm608 = vcmask 523712
          %v609 = vsel %vm608, %v607, %v602
          %v610 = vadd.s32 %v432, 4294967232
          %v611 = vlaneseq
          %v612 = vshrl.u32 %v611, 7
          %v613 = vsub.s32 %v610, %v612
          %v614 = vrot.slane %v573, %v613
          %vm615 = vcmask 589312
          %v616 = vsel %vm615, %v614, %v609
          %v617 = vadd.s32 %v432, 4294967224
          %v618 = vlaneseq
          %v619 = vshrl.u32 %v618, 7
          %v620 = vsub.s32 %v617, %v619
          %v621 = vrot.slane %v576, %v620
          %vm622 = vcmask 654912
          %v623 = vsel %vm622, %v621, %v616
          %v624 = vlaneseq
          %v625 = vshrl.u32 %v624, 7
          %v626 = vsub.s32 %v598, %v625
          %v627 = vrot.slane %v579, %v626
          %v628 = vlaneseq
          %v629 = vshrl.u32 %v628, 7
          %v630 = vsub.s32 %v603, %v629
          %v631 = vrot.slane %v582, %v630
          %v632 = vsel %vm608, %v631, %v627
          %v633 = vlaneseq
          %v634 = vshrl.u32 %v633, 7
          %v635 = vsub.s32 %v610, %v634
          %v636 = vrot.slane %v585, %v635
          %v637 = vsel %vm615, %v636, %v632
          %v638 = vlaneseq
          %v639 = vshrl.u32 %v638, 7
          %v640 = vsub.s32 %v617, %v639
          %v641 = vrot.slane %v588, %v640
          %v642 = vsel %vm622, %v641, %v637
          %v643 = vsel %vm441, %v642, %v623
          %v645 = vadd.f32 %v589, %v643
          %vm646 = vcmask 648576
          %647 = vst.msk [vmem:[#allocation2] sm:$0x3] %vm646, %v645
          %v648 = vld [vmem:[#allocation11] sm:$0xff]
          %v649 = vld [vmem:[#allocation11 + $0x8] sm:$0xff]
          %v650 = vld [vmem:[#allocation11 + $0x10] sm:$0xff]
          %v651 = vld [vmem:[#allocation11 + $0x18] sm:$0xff]
          %v652 = vld [vmem:[#allocation11 + $0x20] sm:$0xff]
          %v653 = vld [vmem:[#allocation11 + $0x28] sm:$0xff]
          %v654 = vld [vmem:[#allocation11 + $0x30] sm:$0xff]
          %v655 = vld [vmem:[#allocation11 + $0x38] sm:$0xff]
          %v656 = vld [vmem:[#allocation11 + $0x40] sm:$0xff]
          %v657 = vld [vmem:[#allocation11 + $0x48] sm:$0xff]
          %v658 = vld [vmem:[#allocation11 + $0x50] sm:$0xff]
          %v659 = vld [vmem:[#allocation11 + $0x58] sm:$0xff]
          %v660 = vsel %vm564, %v648, 0.0
          %661 = vadd.xlane.f32.xlu0 %v660
          %v662 = vpop.xlane.xlu0 %661
          %v663 = vsel %vm564, %v649, 0.0
          %664 = vadd.xlane.f32.xlu0 %v663
          %v665 = vpop.xlane.xlu0 %664
          %v666 = vsel %vm564, %v650, 0.0
          %667 = vadd.xlane.f32.xlu0 %v666
          %v668 = vpop.xlane.xlu0 %667
          %v669 = vsel %vm564, %v651, 0.0
          %670 = vadd.xlane.f32.xlu0 %v669
          %v671 = vpop.xlane.xlu0 %670
          %v672 = vsel %vm564, %v652, 0.0
          %673 = vadd.xlane.f32.xlu0 %v672
          %v674 = vpop.xlane.xlu0 %673
          %v675 = vsel %vm564, %v653, 0.0
          %676 = vadd.xlane.f32.xlu0 %v675
          %v677 = vpop.xlane.xlu0 %676
          %v678 = vsel %vm564, %v654, 0.0
          %679 = vadd.xlane.f32.xlu0 %v678
          %v680 = vpop.xlane.xlu0 %679
          %v681 = vsel %vm564, %v655, 0.0
          %682 = vadd.xlane.f32.xlu0 %v681
          %v683 = vpop.xlane.xlu0 %682
          %v684 = vsel %vm564, %v656, 0.0
          %685 = vadd.xlane.f32.xlu0 %v684
          %v686 = vpop.xlane.xlu0 %685
          %v687 = vsel %vm564, %v657, 0.0
          %688 = vadd.xlane.f32.xlu0 %v687
          %v689 = vpop.xlane.xlu0 %688
          %v690 = vsel %vm564, %v658, 0.0
          %691 = vadd.xlane.f32.xlu0 %v690
          %v692 = vpop.xlane.xlu0 %691
          %v693 = vsel %vm564, %v659, 0.0
          %694 = vadd.xlane.f32.xlu0 %v693
          %v695 = vpop.xlane.xlu0 %694
          %v696 = vld [vmem:[#allocation2] sm:$0x3]
          %v709 = vadd.s32 %v432, 4294967216
          %v710 = vlaneseq
          %v711 = vshrl.u32 %v710, 7
          %v712 = vsub.s32 %v709, %v711
          %v713 = vrot.slane %v662, %v712
          %v714 = vadd.s32 %v432, 4294967208
          %v715 = vlaneseq
          %v716 = vshrl.u32 %v715, 7
          %v717 = vsub.s32 %v714, %v716
          %v718 = vrot.slane %v665, %v717
          %vm719 = vcmask 786112
          %v720 = vsel %vm719, %v718, %v713
          %v721 = vadd.s32 %v432, 4294967200
          %v722 = vlaneseq
          %v723 = vshrl.u32 %v722, 7
          %v724 = vsub.s32 %v721, %v723
          %v725 = vrot.slane %v668, %v724
          %vm726 = vcmask 851712
          %v727 = vsel %vm726, %v725, %v720
          %v728 = vadd.s32 %v432, 4294967192
          %v729 = vlaneseq
          %v730 = vshrl.u32 %v729, 7
          %v731 = vsub.s32 %v728, %v730
          %v732 = vrot.slane %v671, %v731
          %vm733 = vcmask 917312
          %v734 = vsel %vm733, %v732, %v727
          %v735 = vadd.s32 %v432, 4294967184
          %v736 = vlaneseq
          %v737 = vshrl.u32 %v736, 7
          %v738 = vsub.s32 %v735, %v737
          %v739 = vrot.slane %v674, %v738
          %vm740 = vcmask 982912
          %v741 = vsel %vm740, %v739, %v734
          %v742 = vadd.s32 %v432, 4294967176
          %v743 = vlaneseq
          %v744 = vshrl.u32 %v743, 7
          %v745 = vsub.s32 %v742, %v744
          %v746 = vrot.slane %v677, %v745
          %vm747 = vcmask 1048512
          %v748 = vsel %vm747, %v746, %v741
          %v749 = vlaneseq
          %v750 = vshrl.u32 %v749, 7
          %v751 = vsub.s32 %v709, %v750
          %v752 = vrot.slane %v680, %v751
          %v753 = vlaneseq
          %v754 = vshrl.u32 %v753, 7
          %v755 = vsub.s32 %v714, %v754
          %v756 = vrot.slane %v683, %v755
          %v757 = vsel %vm719, %v756, %v752
          %v758 = vlaneseq
          %v759 = vshrl.u32 %v758, 7
          %v760 = vsub.s32 %v721, %v759
          %v761 = vrot.slane %v686, %v760
          %v762 = vsel %vm726, %v761, %v757
          %v763 = vlaneseq
          %v764 = vshrl.u32 %v763, 7
          %v765 = vsub.s32 %v728, %v764
          %v766 = vrot.slane %v689, %v765
          %v767 = vsel %vm733, %v766, %v762
          %v768 = vlaneseq
          %v769 = vshrl.u32 %v768, 7
          %v770 = vsub.s32 %v735, %v769
          %v771 = vrot.slane %v692, %v770
          %v772 = vsel %vm740, %v771, %v767
          %v773 = vlaneseq
          %v774 = vshrl.u32 %v773, 7
          %v775 = vsub.s32 %v742, %v774
          %v776 = vrot.slane %v695, %v775
          %v777 = vsel %vm747, %v776, %v772
          %v778 = vsel %vm441, %v777, %v748
          %v780 = vadd.f32 %v696, %v778
          %vm781 = vcmask 1042048
          %782 = vst.msk [vmem:[#allocation2] sm:$0x3] %vm781, %v780
        $region80: #{tpu_custom_call.1} parent=47 // pred_fallthru
          _
        %p783 = scmp.eq.s32.totalorder %s27, 1
        // Predicated region
        $region81: #{tpu_custom_call.1} parent=47 // pred_check
          %p784 = pneg %p783
        $region82: #{tpu_custom_call.1} parent=47 // pred_check_branch
          %786 = sbr.rel (%p784) target = $region84
        $region83: #{tpu_custom_call.1} parent=47 // pred_region
          %v787 = vld [vmem:[#allocation2] sm:$0x3]
          %v788 = vld [vmem:[#allocation12] sm:$0xff]
          %v789 = vld [vmem:[#allocation12 + $0x8] sm:$0xff]
          %v790 = vld [vmem:[#allocation12 + $0x10] sm:$0xff]
          %v791 = vld [vmem:[#allocation12 + $0x18] sm:$0xff]
          %v792 = vld [vmem:[#allocation12 + $0x20] sm:$0xff]
          %v793 = vld [vmem:[#allocation12 + $0x28] sm:$0xff]
          %v794 = vld [vmem:[#allocation12 + $0x30] sm:$0xff]
          %v795 = vld [vmem:[#allocation12 + $0x38] sm:$0xff]
          %v796 = vld [vmem:[#allocation12 + $0x40] sm:$0xff]
          %v797 = vld [vmem:[#allocation12 + $0x48] sm:$0xff]
          %v798 = vld [vmem:[#allocation12 + $0x50] sm:$0xff]
          %v799 = vld [vmem:[#allocation12 + $0x58] sm:$0xff]
          %v800 = vld [vmem:[#allocation12 + $0x60] sm:$0xff]
          %v801 = vld [vmem:[#allocation12 + $0x68] sm:$0xff]
          %v802 = vld [vmem:[#allocation12 + $0x70] sm:$0xff]
          %v803 = vld [vmem:[#allocation12 + $0x78] sm:$0xff]
          %v804 = vld [vmem:[%s6] sm:$0x1]
          %v806 = vlaneseq
          %v807 = vshrl.u32 %v806, 7
          %v808 = vsub.s32 0, %v807
          %v809 = vrot.slane %v804, %v808
          %811 = vmatprep.subr.mxu0 0.0
          %812 = vmatpush1.msra.mxu0 %v788
          %813 = vmatprep.subr.mxu0 0.0
          %814 = vmatpush1.msra.mxu0 %v789
          %815 = vmatprep.subr.mxu0 0.0
          %816 = vmatpush1.msra.mxu0 %v790
          %817 = vmatprep.subr.mxu0 0.0
          %818 = vmatpush1.msra.mxu0 %v791
          %819 = vmatprep.subr.mxu0 0.0
          %820 = vmatpush1.msra.mxu0 %v792
          %821 = vmatprep.subr.mxu0 0.0
          %822 = vmatpush1.msra.mxu0 %v793
          %823 = vmatprep.subr.mxu0 0.0
          %824 = vmatpush1.msra.mxu0 %v794
          %825 = vmatprep.subr.mxu0 0.0
          %826 = vmatpush1.msra.mxu0 %v795
          %827 = vmatprep.subr.mxu0 0.0
          %828 = vmatpush1.msra.mxu0 %v796
          %829 = vmatprep.subr.mxu0 0.0
          %830 = vmatpush1.msra.mxu0 %v797
          %831 = vmatprep.subr.mxu0 0.0
          %832 = vmatpush1.msra.mxu0 %v798
          %833 = vmatprep.subr.mxu0 0.0
          %834 = vmatpush1.msra.mxu0 %v799
          %835 = vmatprep.subr.mxu0 0.0
          %836 = vmatpush1.msra.mxu0 %v800
          %837 = vmatprep.subr.mxu0 0.0
          %838 = vmatpush1.msra.mxu0 %v801
          %839 = vmatprep.subr.mxu0 0.0
          %840 = vmatpush1.msra.mxu0 %v802
          %841 = vmatprep.subr.mxu0 0.0
          %842 = vmatpush1.msra.mxu0 %v803
          %843 = vmatprep.subr.mxu0 0.0
          %844 = vmatpush1.msra.mxu0 0.0
          %845 = vmatprep.subr.mxu0 0.0
          %846 = vmatpush1.msra.mxu0 0.0
          %847 = vmatprep.subr.mxu0 0.0
          %848 = vmatpush1.msra.mxu0 0.0
          %849 = vmatprep.subr.mxu0 0.0
          %850 = vmatpush1.msra.mxu0 0.0
          %851 = vmatprep.subr.mxu0 0.0
          %852 = vmatpush1.msra.mxu0 0.0
          %853 = vmatprep.subr.mxu0 0.0
          %854 = vmatpush1.msra.mxu0 0.0
          %855 = vmatprep.subr.mxu0 0.0
          %856 = vmatpush1.msra.mxu0 0.0
          %857 = vmatprep.subr.mxu0 0.0
          %858 = vmatpush1.msra.mxu0 0.0
          %859 = vmatprep.subr.mxu0 0.0
          %860 = vmatpush1.msra.mxu0 0.0
          %861 = vmatprep.subr.mxu0 0.0
          %862 = vmatpush1.msra.mxu0 0.0
          %863 = vmatprep.subr.mxu0 0.0
          %864 = vmatpush1.msra.mxu0 0.0
          %865 = vmatprep.subr.mxu0 0.0
          %866 = vmatpush1.msra.mxu0 0.0
          %867 = vmatprep.subr.mxu0 0.0
          %868 = vmatpush1.msra.mxu0 0.0
          %869 = vmatprep.subr.mxu0 0.0
          %870 = vmatpush1.msra.mxu0 0.0
          %871 = vmatprep.subr.mxu0 0.0
          %872 = vmatpush1.msra.mxu0 0.0
          %873 = vmatprep.subr.mxu0 0.0
          %874 = vmatpush1.msra.mxu0 0.0
          %875 = vmatprep.mubr.f32.mxu0 0.0
          %876 = vmatmul.mubr.f32.gmra.mrb[0].mxu0 %v787
          %v877 = vpop.f32.mrb[0].mxu0
          %v878 = vadd.f32 %v809, %v877
          %v879 = vpop.f32.mrb[0].mxu0
          %880 = vdwg.mxu0
          %v881 = vxor.u32 %v878, 2147483648
          %v882 = vmul.f32 %v881, 1.442695
          %v883 = vpow.pop %v882
          %v884 = vadd.f32 %v883, 1.0
          %v885 = vrcp.pop %v884
          %v886 = vmul.f32 1.0, %v885
          %887 = vst [vmem:[#allocation14] sm:$0x3] %v886
        $region84: #{tpu_custom_call.1} parent=47 // pred_fallthru
          _
        // Predicated region
        $region85: #{tpu_custom_call.1} parent=47 // pred_check
          %p888 = pneg %p202
        $region86: #{tpu_custom_call.1} parent=47 // pred_check_branch
          %890 = sbr.rel (%p888) target = $region88
        $region87: #{tpu_custom_call.1} parent=47 // pred_region
          %s892 = ssub.s32 32, 32
          %893 = vsyncadd [#allocation5], %s892
          %s895 = sshll.u32 [#allocation14], 4
          %s896 = int_to_ptr.vmem [resolvable:$true] %s895
          %898 = dma.vmem_to_hbm [thread:$0]  %s896, 32, %s7, [#allocation5]
        $region88: #{tpu_custom_call.1} parent=47 // pred_fallthru
          _
        // Predicated region
        $region89: #{tpu_custom_call.1} parent=47 // pred_check
          %p899 = pneg %p202
        $region90: #{tpu_custom_call.1} parent=47 // pred_check_branch
          %901 = sbr.rel (%p899) target = $region92
        $region91: #{tpu_custom_call.1} parent=47 // pred_region
          %902 = dma.done [#allocation5], 32
        $region92: #{tpu_custom_call.1} parent=47 // pred_fallthru
          _
      $region48: #{tpu_custom_call.1} parent=5 // pred_fallthru
        _
      %p903 = scmp.le.s32.totalorder 2, %s22
      // Predicated region
      $region93: #{tpu_custom_call.1} parent=5 // pred_check
        %p904 = pneg %p903
      $region94: #{tpu_custom_call.1} parent=5 // pred_check_branch
        %906 = sbr.rel (%p904) target = $region96
      $region95: #{tpu_custom_call.1} parent=5 // pred_region
        %s907 = ssub.s32 %s22, 2
      $region96: #{tpu_custom_call.1} parent=5 // pred_fallthru
        _
    $region6: #{tpu_custom_call.1} parent=1 // loop_footer
      %s26 = sadd.s32 1, %s22
    $region7: #{tpu_custom_call.1} parent=1 // loop_footer_branch
      %21 = sbr.rel target = $region3
    $region8: #{tpu_custom_call.1} parent=1 // loop_exit
      _
    %908 = vsyncpa [#allocation4], 1
    %s909 = scalar_lea.sflag [#allocation4], 1
    %910 = vsyncpa %s909, 1
    %911 = vsyncpa [#allocation7], 1
    %s912 = scalar_lea.sflag [#allocation7], 1
    %913 = vsyncpa %s912, 1
    %914 = vsyncpa [#allocation10], 1
    %915 = vsyncpa [#allocation13], 1
    %916 = vsyncpa [#allocation5], 1
    %s917 = scalar_lea.sflag [#allocation5], 1
    %918 = vsyncpa %s917, 1

</llo_original>
